<compile_context>
chip_gen: v5e
topology: v5e:2x2
jax: 0.10.0
libtpu: 0.0.40
codegen_flags: <defaults>
</compile_context>

<pallas_src>
import functools

import jax
import jax.numpy as jnp
from jax import lax
from jax.experimental import pallas as pl
from jax.experimental.pallas import tpu as pltpu

N_EMBD = 64
NUM_HEADS = 4
HEAD_SIZE = N_EMBD // NUM_HEADS  # 16


def _mha_kernel(x_ref, wqkv_ref, wp_ref, bp_ref, o_ref, *, B, T, C):
    # x_ref: (B*T, C) bf16; wqkv_ref: (C, 3C) bf16; wp_ref: (C, C) bf16;
    # bp_ref: (1, C) f32; o_ref: (B*T, C) f32
    x = x_ref[...]
    wqkv = wqkv_ref[...]
    wp = wp_ref[...]

    # Fused QKV projection: one MXU matmul with N = 3C lanes, f32 accumulate.
    qkv = jnp.dot(x, wqkv, preferred_element_type=jnp.float32)      # (B*T, 3C)

    scale = HEAD_SIZE ** -0.5
    row = lax.broadcasted_iota(jnp.int32, (1, T, T), 1)
    col = lax.broadcasted_iota(jnp.int32, (1, T, T), 2)
    causal = col <= row                                             # (1, T, T)

    # Start the accumulator at the broadcast projection bias.
    out = jnp.broadcast_to(bp_ref[...], (B * T, C)).astype(jnp.float32)

    for h in range(NUM_HEADS):                                      # static unroll (4)
        s = h * HEAD_SIZE
        qh = qkv[:, s:s + HEAD_SIZE].reshape(B, T, HEAD_SIZE).astype(jnp.bfloat16)
        kh = qkv[:, C + s:C + s + HEAD_SIZE].reshape(B, T, HEAD_SIZE).astype(jnp.bfloat16)
        vh = qkv[:, 2 * C + s:2 * C + s + HEAD_SIZE].reshape(B, T, HEAD_SIZE).astype(jnp.bfloat16)

        # Batched over B, contracting the head dim: no explicit transpose of k.
        scores = jnp.einsum("btd,bsd->bts", qh, kh,
                            preferred_element_type=jnp.float32) * scale   # (B, T, T)

        # Numerically-safe softmax; masking after exp (zeroing) is exactly the
        # softmax over -inf-masked logits since the max cancels in the ratio.
        m = jnp.max(scores, axis=-1, keepdims=True)
        p = jnp.exp(scores - m)
        p = jnp.where(causal, p, 0.0)
        denom = jnp.sum(p, axis=-1, keepdims=True)
        p = p * pl.reciprocal(denom, approx=True)                   # divide on EUP

        ctx = jnp.einsum("bts,bsd->btd", p.astype(jnp.bfloat16), vh,
                         preferred_element_type=jnp.float32)        # (B, T, hs)

        # Fold this head's output-projection slice in directly (== concat @ Wp).
        out = out + jnp.dot(ctx.reshape(B * T, HEAD_SIZE).astype(jnp.bfloat16),
                            wp[s:s + HEAD_SIZE, :],
                            preferred_element_type=jnp.float32)

    # dropout(p=0.0) is the identity
    o_ref[...] = out.astype(o_ref.dtype)


@jax.jit
def multi_head_attention(x, wq, wk, wv, wp, bp):
    B, T, C = x.shape
    # Fuse the three projection weights; cast matmul operands to bf16 (one-time
    # layout plumbing outside the kernel).
    w_qkv = jnp.concatenate([wq, wk, wv], axis=1).astype(jnp.bfloat16)   # (C, 3C)
    x2 = x.reshape(B * T, C).astype(jnp.bfloat16)
    wp_b = wp.astype(jnp.bfloat16)

    kernel = functools.partial(_mha_kernel, B=B, T=T, C=C)
    out = pl.pallas_call(
        kernel,
        out_shape=jax.ShapeDtypeStruct((B * T, C), x.dtype),
        grid_spec=pltpu.PrefetchScalarGridSpec(
            num_scalar_prefetch=0,
            grid=(1,),                                   # problem is tiny: one step
            in_specs=[
                pl.BlockSpec((B * T, C), lambda i: (0, 0)),
                pl.BlockSpec((C, 3 * C), lambda i: (0, 0)),
                pl.BlockSpec((C, C), lambda i: (0, 0)),
                pl.BlockSpec((1, C), lambda i: (0, 0)),
            ],
            out_specs=pl.BlockSpec((B * T, C), lambda i: (0, 0)),
        ),
        compiler_params=pltpu.CompilerParams(dimension_semantics=("arbitrary",)),
    )(x2, w_qkv, wp_b, bp)
    # TODO(synk): at these shapes (16x64 output) a lane-dense (>=128) out slab is
    # not worth the in-kernel relayout; revisit if T or B grows.
    return out.reshape(B, T, C)


def reference(x, wq, wk, wv, wp, bp):
    # pure-JAX f32 reference of the PyTorch forward
    B, T, C = x.shape
    q = x @ wq
    k = x @ wk
    v = x @ wv
    q = q.reshape(B, T, NUM_HEADS, HEAD_SIZE).transpose(0, 2, 1, 3)
    k = k.reshape(B, T, NUM_HEADS, HEAD_SIZE).transpose(0, 2, 1, 3)
    v = v.reshape(B, T, NUM_HEADS, HEAD_SIZE).transpose(0, 2, 1, 3)
    scores = jnp.einsum("bhtd,bhsd->bhts", q, k) * (HEAD_SIZE ** -0.5)
    mask = jnp.tril(jnp.ones((T, T), dtype=bool))
    scores = jnp.where(mask, scores, -jnp.inf)
    p = jax.nn.softmax(scores, axis=-1)
    out = jnp.einsum("bhts,bhsd->bhtd", p, v)
    out = out.transpose(0, 2, 1, 3).reshape(B, T, C)
    return out @ wp + bp[0]


if __name__ == "__main__":
    key = jax.random.PRNGKey(0)
    kx, kq, kk, kv, kp, kb = jax.random.split(key, 6)

    B, T, C = 2, 8, N_EMBD
    x = jax.random.normal(kx, (B, T, C), dtype=jnp.float32)

    # deterministic, PyTorch-like uniform(-1/sqrt(fan_in), 1/sqrt(fan_in)) init;
    # weights stored as (in_features, out_features) so y = x @ W (== torch Linear)
    bound = 1.0 / (C ** 0.5)
    wq = jax.random.uniform(kq, (C, C), jnp.float32, -bound, bound)
    wk = jax.random.uniform(kk, (C, C), jnp.float32, -bound, bound)
    wv = jax.random.uniform(kv, (C, C), jnp.float32, -bound, bound)
    wp = jax.random.uniform(kp, (C, C), jnp.float32, -bound, bound)
    bp = jax.random.uniform(kb, (1, C), jnp.float32, -bound, bound)

    out = multi_head_attention(x, wq, wk, wv, wp, bp)
    out = jax.block_until_ready(out)

    ref = reference(x, wq, wk, wv, wp, bp)
    assert out.shape == (B, T, C)
    # bf16 MXU operands (f32 accumulation) vs pure-f32 reference -> relaxed tolerance
    assert jnp.allclose(out, ref, atol=5e-2, rtol=5e-2), "mismatch vs reference"

    print("KERNEL_OK")
</pallas_src>

<mosaic_0001>
module attributes {stable_mosaic.version = 11 : i64} {
  func.func @_mha_kernel(%arg0: i32, %arg1: memref<16x64xbf16, #tpu.memory_space<vmem>>, %arg2: memref<64x192xbf16, #tpu.memory_space<vmem>>, %arg3: memref<64x64xbf16, #tpu.memory_space<vmem>>, %arg4: memref<1x64xf32, #tpu.memory_space<vmem>>, %arg5: memref<16x64xf32, #tpu.memory_space<vmem>>) attributes {dimension_semantics = [#tpu.dimension_semantics<arbitrary>], iteration_bounds = array<i64: 1>, scalar_prefetch = 0 : i64, scratch_operands = 0 : i64, tpu.core_type = #tpu.core_type<tc>, window_params = [{pipeline_mode = #tpu.pipeline_mode<synchronous>, transform_indices = @transform_0, window_bounds = array<i64: 16, 64>}, {pipeline_mode = #tpu.pipeline_mode<synchronous>, transform_indices = @transform_1, window_bounds = array<i64: 64, 192>}, {pipeline_mode = #tpu.pipeline_mode<synchronous>, transform_indices = @transform_2, window_bounds = array<i64: 64, 64>}, {pipeline_mode = #tpu.pipeline_mode<synchronous>, transform_indices = @transform_3, window_bounds = array<i64: 1, 64>}, {pipeline_mode = #tpu.pipeline_mode<synchronous>, transform_indices = @transform_4, window_bounds = array<i64: 16, 64>}]} {
    %c0 = arith.constant 0 : index
    %c0_0 = arith.constant 0 : index
    %0 = vector.load %arg1[%c0, %c0_0] : memref<16x64xbf16, #tpu.memory_space<vmem>>, vector<16x64xbf16>
    %c0_1 = arith.constant 0 : index
    %c0_2 = arith.constant 0 : index
    %1 = vector.load %arg2[%c0_1, %c0_2] : memref<64x192xbf16, #tpu.memory_space<vmem>>, vector<64x192xbf16>
    %c0_3 = arith.constant 0 : index
    %c0_4 = arith.constant 0 : index
    %2 = vector.load %arg3[%c0_3, %c0_4] : memref<64x64xbf16, #tpu.memory_space<vmem>>, vector<64x64xbf16>
    %cst = arith.constant dense<0.000000e+00> : vector<16x192xf32>
    %3 = tpu.matmul %0, %1, %cst {dimension_numbers = #tpu.dot_dimension_numbers<[1], [0], [0], [1], [0, 0, 1, 1], [], []>} : vector<16x64xbf16>, vector<64x192xbf16>, vector<16x192xf32> -> vector<16x192xf32>
    %4 = tpu.iota {dimensions = array<i32: 1>} : vector<1x8x8xi32>
    %5 = tpu.iota {dimensions = array<i32: 2>} : vector<1x8x8xi32>
    %6 = arith.cmpi sle, %5, %4 : vector<1x8x8xi32>
    %c0_5 = arith.constant 0 : index
    %c0_6 = arith.constant 0 : index
    %7 = vector.load %arg4[%c0_5, %c0_6] : memref<1x64xf32, #tpu.memory_space<vmem>>, vector<1x64xf32>
    %8 = vector.shape_cast %7 : vector<1x64xf32> to vector<1x64xf32>
    %9 = vector.broadcast %8 : vector<1x64xf32> to vector<16x64xf32>
    %10 = vector.extract_strided_slice %3 {offsets = [0, 0], sizes = [16, 16], strides = [1, 1]} : vector<16x192xf32> to vector<16x16xf32>
    %11 = vector.shape_cast %10 : vector<16x16xf32> to vector<2x8x16xf32>
    %12 = arith.truncf %11 : vector<2x8x16xf32> to vector<2x8x16xbf16>
    %13 = vector.extract_strided_slice %3 {offsets = [0, 64], sizes = [16, 16], strides = [1, 1]} : vector<16x192xf32> to vector<16x16xf32>
    %14 = vector.shape_cast %13 : vector<16x16xf32> to vector<2x8x16xf32>
    %15 = arith.truncf %14 : vector<2x8x16xf32> to vector<2x8x16xbf16>
    %16 = vector.extract_strided_slice %3 {offsets = [0, 128], sizes = [16, 16], strides = [1, 1]} : vector<16x192xf32> to vector<16x16xf32>
    %17 = vector.shape_cast %16 : vector<16x16xf32> to vector<2x8x16xf32>
    %18 = arith.truncf %17 : vector<2x8x16xf32> to vector<2x8x16xbf16>
    "tpu.trace_start"() <{level = 10 : i32, message = "btd,bsd->bts"}> : () -> ()
    %cst_7 = arith.constant dense<0.000000e+00> : vector<2x8x8xf32>
    %19 = tpu.matmul %12, %15, %cst_7 {dimension_numbers = #tpu.dot_dimension_numbers<[2], [2], [1], [1], [0, 0, 0, 1, 1, 1], [0], [0]>} : vector<2x8x16xbf16>, vector<2x8x16xbf16>, vector<2x8x8xf32> -> vector<2x8x8xf32>
    "tpu.trace_stop"() : () -> ()
    %cst_8 = arith.constant 2.500000e-01 : f32
    %20 = vector.broadcast %cst_8 : f32 to vector<2x8x8xf32>
    %21 = arith.mulf %19, %20 : vector<2x8x8xf32>
    %cst_9 = arith.constant dense<0xFF800000> : vector<2x8xf32>
    %22 = vector.multi_reduction <maximumf>, %21, %cst_9 [2] : vector<2x8x8xf32> to vector<2x8xf32>
    %23 = vector.shape_cast %22 : vector<2x8xf32> to vector<2x8x1xf32>
    %24 = vector.broadcast %23 : vector<2x8x1xf32> to vector<2x8x8xf32>
    %25 = arith.subf %21, %24 : vector<2x8x8xf32>
    %26 = math.exp %25 : vector<2x8x8xf32>
    %cst_10 = arith.constant 0.000000e+00 : f32
    %27 = vector.shape_cast %6 : vector<1x8x8xi1> to vector<1x8x8xi1>
    %28 = vector.broadcast %27 : vector<1x8x8xi1> to vector<2x8x8xi1>
    %29 = vector.broadcast %cst_10 : f32 to vector<2x8x8xf32>
    %30 = arith.select %28, %26, %29 : vector<2x8x8xi1>, vector<2x8x8xf32>
    %cst_11 = arith.constant dense<0.000000e+00> : vector<2x8xf32>
    %31 = vector.multi_reduction <add>, %30, %cst_11 [2] : vector<2x8x8xf32> to vector<2x8xf32>
    %32 = vector.shape_cast %31 : vector<2x8xf32> to vector<2x8x1xf32>
    %33 = tpu.reciprocal %32 {approx = true} : vector<2x8x1xf32> -> vector<2x8x1xf32>
    %34 = vector.broadcast %33 : vector<2x8x1xf32> to vector<2x8x8xf32>
    %35 = arith.mulf %30, %34 : vector<2x8x8xf32>
    %36 = arith.truncf %35 : vector<2x8x8xf32> to vector<2x8x8xbf16>
    "tpu.trace_start"() <{level = 10 : i32, message = "bts,bsd->btd"}> : () -> ()
    %cst_12 = arith.constant dense<0.000000e+00> : vector<2x8x16xf32>
    %37 = tpu.matmul %36, %18, %cst_12 {dimension_numbers = #tpu.dot_dimension_numbers<[2], [1], [1], [2], [0, 0, 0, 1, 1, 2], [0], [0]>} : vector<2x8x8xbf16>, vector<2x8x16xbf16>, vector<2x8x16xf32> -> vector<2x8x16xf32>
    "tpu.trace_stop"() : () -> ()
    %38 = vector.shape_cast %37 : vector<2x8x16xf32> to vector<16x16xf32>
    %39 = arith.truncf %38 : vector<16x16xf32> to vector<16x16xbf16>
    %40 = vector.extract_strided_slice %2 {offsets = [0, 0], sizes = [16, 64], strides = [1, 1]} : vector<64x64xbf16> to vector<16x64xbf16>
    %cst_13 = arith.constant dense<0.000000e+00> : vector<16x64xf32>
    %41 = tpu.matmul %39, %40, %cst_13 {dimension_numbers = #tpu.dot_dimension_numbers<[1], [0], [0], [1], [0, 0, 1, 1], [], []>} : vector<16x16xbf16>, vector<16x64xbf16>, vector<16x64xf32> -> vector<16x64xf32>
    %42 = arith.addf %9, %41 : vector<16x64xf32>
    %43 = vector.extract_strided_slice %3 {offsets = [0, 16], sizes = [16, 16], strides = [1, 1]} : vector<16x192xf32> to vector<16x16xf32>
    %44 = vector.shape_cast %43 : vector<16x16xf32> to vector<2x8x16xf32>
    %45 = arith.truncf %44 : vector<2x8x16xf32> to vector<2x8x16xbf16>
    %46 = vector.extract_strided_slice %3 {offsets = [0, 80], sizes = [16, 16], strides = [1, 1]} : vector<16x192xf32> to vector<16x16xf32>
    %47 = vector.shape_cast %46 : vector<16x16xf32> to vector<2x8x16xf32>
    %48 = arith.truncf %47 : vector<2x8x16xf32> to vector<2x8x16xbf16>
    %49 = vector.extract_strided_slice %3 {offsets = [0, 144], sizes = [16, 16], strides = [1, 1]} : vector<16x192xf32> to vector<16x16xf32>
    %50 = vector.shape_cast %49 : vector<16x16xf32> to vector<2x8x16xf32>
    %51 = arith.truncf %50 : vector<2x8x16xf32> to vector<2x8x16xbf16>
    "tpu.trace_start"() <{level = 10 : i32, message = "btd,bsd->bts"}> : () -> ()
    %cst_14 = arith.constant dense<0.000000e+00> : vector<2x8x8xf32>
    %52 = tpu.matmul %45, %48, %cst_14 {dimension_numbers = #tpu.dot_dimension_numbers<[2], [2], [1], [1], [0, 0, 0, 1, 1, 1], [0], [0]>} : vector<2x8x16xbf16>, vector<2x8x16xbf16>, vector<2x8x8xf32> -> vector<2x8x8xf32>
    "tpu.trace_stop"() : () -> ()
    %cst_15 = arith.constant 2.500000e-01 : f32
    %53 = vector.broadcast %cst_15 : f32 to vector<2x8x8xf32>
    %54 = arith.mulf %52, %53 : vector<2x8x8xf32>
    %cst_16 = arith.constant dense<0xFF800000> : vector<2x8xf32>
    %55 = vector.multi_reduction <maximumf>, %54, %cst_16 [2] : vector<2x8x8xf32> to vector<2x8xf32>
    %56 = vector.shape_cast %55 : vector<2x8xf32> to vector<2x8x1xf32>
    %57 = vector.broadcast %56 : vector<2x8x1xf32> to vector<2x8x8xf32>
    %58 = arith.subf %54, %57 : vector<2x8x8xf32>
    %59 = math.exp %58 : vector<2x8x8xf32>
    %cst_17 = arith.constant 0.000000e+00 : f32
    %60 = vector.shape_cast %6 : vector<1x8x8xi1> to vector<1x8x8xi1>
    %61 = vector.broadcast %60 : vector<1x8x8xi1> to vector<2x8x8xi1>
    %62 = vector.broadcast %cst_17 : f32 to vector<2x8x8xf32>
    %63 = arith.select %61, %59, %62 : vector<2x8x8xi1>, vector<2x8x8xf32>
    %cst_18 = arith.constant dense<0.000000e+00> : vector<2x8xf32>
    %64 = vector.multi_reduction <add>, %63, %cst_18 [2] : vector<2x8x8xf32> to vector<2x8xf32>
    %65 = vector.shape_cast %64 : vector<2x8xf32> to vector<2x8x1xf32>
    %66 = tpu.reciprocal %65 {approx = true} : vector<2x8x1xf32> -> vector<2x8x1xf32>
    %67 = vector.broadcast %66 : vector<2x8x1xf32> to vector<2x8x8xf32>
    %68 = arith.mulf %63, %67 : vector<2x8x8xf32>
    %69 = arith.truncf %68 : vector<2x8x8xf32> to vector<2x8x8xbf16>
    "tpu.trace_start"() <{level = 10 : i32, message = "bts,bsd->btd"}> : () -> ()
    %cst_19 = arith.constant dense<0.000000e+00> : vector<2x8x16xf32>
    %70 = tpu.matmul %69, %51, %cst_19 {dimension_numbers = #tpu.dot_dimension_numbers<[2], [1], [1], [2], [0, 0, 0, 1, 1, 2], [0], [0]>} : vector<2x8x8xbf16>, vector<2x8x16xbf16>, vector<2x8x16xf32> -> vector<2x8x16xf32>
    "tpu.trace_stop"() : () -> ()
    %71 = vector.shape_cast %70 : vector<2x8x16xf32> to vector<16x16xf32>
    %72 = arith.truncf %71 : vector<16x16xf32> to vector<16x16xbf16>
    %73 = vector.extract_strided_slice %2 {offsets = [16, 0], sizes = [16, 64], strides = [1, 1]} : vector<64x64xbf16> to vector<16x64xbf16>
    %cst_20 = arith.constant dense<0.000000e+00> : vector<16x64xf32>
    %74 = tpu.matmul %72, %73, %cst_20 {dimension_numbers = #tpu.dot_dimension_numbers<[1], [0], [0], [1], [0, 0, 1, 1], [], []>} : vector<16x16xbf16>, vector<16x64xbf16>, vector<16x64xf32> -> vector<16x64xf32>
    %75 = arith.addf %42, %74 : vector<16x64xf32>
    %76 = vector.extract_strided_slice %3 {offsets = [0, 32], sizes = [16, 16], strides = [1, 1]} : vector<16x192xf32> to vector<16x16xf32>
    %77 = vector.shape_cast %76 : vector<16x16xf32> to vector<2x8x16xf32>
    %78 = arith.truncf %77 : vector<2x8x16xf32> to vector<2x8x16xbf16>
    %79 = vector.extract_strided_slice %3 {offsets = [0, 96], sizes = [16, 16], strides = [1, 1]} : vector<16x192xf32> to vector<16x16xf32>
    %80 = vector.shape_cast %79 : vector<16x16xf32> to vector<2x8x16xf32>
    %81 = arith.truncf %80 : vector<2x8x16xf32> to vector<2x8x16xbf16>
    %82 = vector.extract_strided_slice %3 {offsets = [0, 160], sizes = [16, 16], strides = [1, 1]} : vector<16x192xf32> to vector<16x16xf32>
    %83 = vector.shape_cast %82 : vector<16x16xf32> to vector<2x8x16xf32>
    %84 = arith.truncf %83 : vector<2x8x16xf32> to vector<2x8x16xbf16>
    "tpu.trace_start"() <{level = 10 : i32, message = "btd,bsd->bts"}> : () -> ()
    %cst_21 = arith.constant dense<0.000000e+00> : vector<2x8x8xf32>
    %85 = tpu.matmul %78, %81, %cst_21 {dimension_numbers = #tpu.dot_dimension_numbers<[2], [2], [1], [1], [0, 0, 0, 1, 1, 1], [0], [0]>} : vector<2x8x16xbf16>, vector<2x8x16xbf16>, vector<2x8x8xf32> -> vector<2x8x8xf32>
    "tpu.trace_stop"() : () -> ()
    %cst_22 = arith.constant 2.500000e-01 : f32
    %86 = vector.broadcast %cst_22 : f32 to vector<2x8x8xf32>
    %87 = arith.mulf %85, %86 : vector<2x8x8xf32>
    %cst_23 = arith.constant dense<0xFF800000> : vector<2x8xf32>
    %88 = vector.multi_reduction <maximumf>, %87, %cst_23 [2] : vector<2x8x8xf32> to vector<2x8xf32>
    %89 = vector.shape_cast %88 : vector<2x8xf32> to vector<2x8x1xf32>
    %90 = vector.broadcast %89 : vector<2x8x1xf32> to vector<2x8x8xf32>
    %91 = arith.subf %87, %90 : vector<2x8x8xf32>
    %92 = math.exp %91 : vector<2x8x8xf32>
    %cst_24 = arith.constant 0.000000e+00 : f32
    %93 = vector.shape_cast %6 : vector<1x8x8xi1> to vector<1x8x8xi1>
    %94 = vector.broadcast %93 : vector<1x8x8xi1> to vector<2x8x8xi1>
    %95 = vector.broadcast %cst_24 : f32 to vector<2x8x8xf32>
    %96 = arith.select %94, %92, %95 : vector<2x8x8xi1>, vector<2x8x8xf32>
    %cst_25 = arith.constant dense<0.000000e+00> : vector<2x8xf32>
    %97 = vector.multi_reduction <add>, %96, %cst_25 [2] : vector<2x8x8xf32> to vector<2x8xf32>
    %98 = vector.shape_cast %97 : vector<2x8xf32> to vector<2x8x1xf32>
    %99 = tpu.reciprocal %98 {approx = true} : vector<2x8x1xf32> -> vector<2x8x1xf32>
    %100 = vector.broadcast %99 : vector<2x8x1xf32> to vector<2x8x8xf32>
    %101 = arith.mulf %96, %100 : vector<2x8x8xf32>
    %102 = arith.truncf %101 : vector<2x8x8xf32> to vector<2x8x8xbf16>
    "tpu.trace_start"() <{level = 10 : i32, message = "bts,bsd->btd"}> : () -> ()
    %cst_26 = arith.constant dense<0.000000e+00> : vector<2x8x16xf32>
    %103 = tpu.matmul %102, %84, %cst_26 {dimension_numbers = #tpu.dot_dimension_numbers<[2], [1], [1], [2], [0, 0, 0, 1, 1, 2], [0], [0]>} : vector<2x8x8xbf16>, vector<2x8x16xbf16>, vector<2x8x16xf32> -> vector<2x8x16xf32>
    "tpu.trace_stop"() : () -> ()
    %104 = vector.shape_cast %103 : vector<2x8x16xf32> to vector<16x16xf32>
    %105 = arith.truncf %104 : vector<16x16xf32> to vector<16x16xbf16>
    %106 = vector.extract_strided_slice %2 {offsets = [32, 0], sizes = [16, 64], strides = [1, 1]} : vector<64x64xbf16> to vector<16x64xbf16>
    %cst_27 = arith.constant dense<0.000000e+00> : vector<16x64xf32>
    %107 = tpu.matmul %105, %106, %cst_27 {dimension_numbers = #tpu.dot_dimension_numbers<[1], [0], [0], [1], [0, 0, 1, 1], [], []>} : vector<16x16xbf16>, vector<16x64xbf16>, vector<16x64xf32> -> vector<16x64xf32>
    %108 = arith.addf %75, %107 : vector<16x64xf32>
    %109 = vector.extract_strided_slice %3 {offsets = [0, 48], sizes = [16, 16], strides = [1, 1]} : vector<16x192xf32> to vector<16x16xf32>
    %110 = vector.shape_cast %109 : vector<16x16xf32> to vector<2x8x16xf32>
    %111 = arith.truncf %110 : vector<2x8x16xf32> to vector<2x8x16xbf16>
    %112 = vector.extract_strided_slice %3 {offsets = [0, 112], sizes = [16, 16], strides = [1, 1]} : vector<16x192xf32> to vector<16x16xf32>
    %113 = vector.shape_cast %112 : vector<16x16xf32> to vector<2x8x16xf32>
    %114 = arith.truncf %113 : vector<2x8x16xf32> to vector<2x8x16xbf16>
    %115 = vector.extract_strided_slice %3 {offsets = [0, 176], sizes = [16, 16], strides = [1, 1]} : vector<16x192xf32> to vector<16x16xf32>
    %116 = vector.shape_cast %115 : vector<16x16xf32> to vector<2x8x16xf32>
    %117 = arith.truncf %116 : vector<2x8x16xf32> to vector<2x8x16xbf16>
    "tpu.trace_start"() <{level = 10 : i32, message = "btd,bsd->bts"}> : () -> ()
    %cst_28 = arith.constant dense<0.000000e+00> : vector<2x8x8xf32>
    %118 = tpu.matmul %111, %114, %cst_28 {dimension_numbers = #tpu.dot_dimension_numbers<[2], [2], [1], [1], [0, 0, 0, 1, 1, 1], [0], [0]>} : vector<2x8x16xbf16>, vector<2x8x16xbf16>, vector<2x8x8xf32> -> vector<2x8x8xf32>
    "tpu.trace_stop"() : () -> ()
    %cst_29 = arith.constant 2.500000e-01 : f32
    %119 = vector.broadcast %cst_29 : f32 to vector<2x8x8xf32>
    %120 = arith.mulf %118, %119 : vector<2x8x8xf32>
    %cst_30 = arith.constant dense<0xFF800000> : vector<2x8xf32>
    %121 = vector.multi_reduction <maximumf>, %120, %cst_30 [2] : vector<2x8x8xf32> to vector<2x8xf32>
    %122 = vector.shape_cast %121 : vector<2x8xf32> to vector<2x8x1xf32>
    %123 = vector.broadcast %122 : vector<2x8x1xf32> to vector<2x8x8xf32>
    %124 = arith.subf %120, %123 : vector<2x8x8xf32>
    %125 = math.exp %124 : vector<2x8x8xf32>
    %cst_31 = arith.constant 0.000000e+00 : f32
    %126 = vector.shape_cast %6 : vector<1x8x8xi1> to vector<1x8x8xi1>
    %127 = vector.broadcast %126 : vector<1x8x8xi1> to vector<2x8x8xi1>
    %128 = vector.broadcast %cst_31 : f32 to vector<2x8x8xf32>
    %129 = arith.select %127, %125, %128 : vector<2x8x8xi1>, vector<2x8x8xf32>
    %cst_32 = arith.constant dense<0.000000e+00> : vector<2x8xf32>
    %130 = vector.multi_reduction <add>, %129, %cst_32 [2] : vector<2x8x8xf32> to vector<2x8xf32>
    %131 = vector.shape_cast %130 : vector<2x8xf32> to vector<2x8x1xf32>
    %132 = tpu.reciprocal %131 {approx = true} : vector<2x8x1xf32> -> vector<2x8x1xf32>
    %133 = vector.broadcast %132 : vector<2x8x1xf32> to vector<2x8x8xf32>
    %134 = arith.mulf %129, %133 : vector<2x8x8xf32>
    %135 = arith.truncf %134 : vector<2x8x8xf32> to vector<2x8x8xbf16>
    "tpu.trace_start"() <{level = 10 : i32, message = "bts,bsd->btd"}> : () -> ()
    %cst_33 = arith.constant dense<0.000000e+00> : vector<2x8x16xf32>
    %136 = tpu.matmul %135, %117, %cst_33 {dimension_numbers = #tpu.dot_dimension_numbers<[2], [1], [1], [2], [0, 0, 0, 1, 1, 2], [0], [0]>} : vector<2x8x8xbf16>, vector<2x8x16xbf16>, vector<2x8x16xf32> -> vector<2x8x16xf32>
    "tpu.trace_stop"() : () -> ()
    %137 = vector.shape_cast %136 : vector<2x8x16xf32> to vector<16x16xf32>
    %138 = arith.truncf %137 : vector<16x16xf32> to vector<16x16xbf16>
    %139 = vector.extract_strided_slice %2 {offsets = [48, 0], sizes = [16, 64], strides = [1, 1]} : vector<64x64xbf16> to vector<16x64xbf16>
    %cst_34 = arith.constant dense<0.000000e+00> : vector<16x64xf32>
    %140 = tpu.matmul %138, %139, %cst_34 {dimension_numbers = #tpu.dot_dimension_numbers<[1], [0], [0], [1], [0, 0, 1, 1], [], []>} : vector<16x16xbf16>, vector<16x64xbf16>, vector<16x64xf32> -> vector<16x64xf32>
    %141 = arith.addf %108, %140 : vector<16x64xf32>
    %c0_35 = arith.constant 0 : index
    %c0_36 = arith.constant 0 : index
    %142 = vector.load %arg5[%c0_35, %c0_36] : memref<16x64xf32, #tpu.memory_space<vmem>>, vector<16x64xf32>
    tpu.vector_store %arg5[%c0_35, %c0_36], %141 {strides = array<i32>} : memref<16x64xf32, #tpu.memory_space<vmem>>, vector<16x64xf32>,
    return
  }
  func.func @transform_0(%arg0: i32) -> (i32, i32) {
    %c0_i32 = arith.constant 0 : i32
    %c0_i32_0 = arith.constant 0 : i32
    %c0_i32_1 = arith.constant 0 : i32
    return %c0_i32, %c0_i32_0 : i32, i32
  }
  func.func @transform_1(%arg0: i32) -> (i32, i32) {
    %c0_i32 = arith.constant 0 : i32
    %c0_i32_0 = arith.constant 0 : i32
    %c0_i32_1 = arith.constant 0 : i32
    return %c0_i32, %c0_i32_0 : i32, i32
  }
  func.func @transform_2(%arg0: i32) -> (i32, i32) {
    %c0_i32 = arith.constant 0 : i32
    %c0_i32_0 = arith.constant 0 : i32
    %c0_i32_1 = arith.constant 0 : i32
    return %c0_i32, %c0_i32_0 : i32, i32
  }
  func.func @transform_3(%arg0: i32) -> (i32, i32) {
    %c0_i32 = arith.constant 0 : i32
    %c0_i32_0 = arith.constant 0 : i32
    %c0_i32_1 = arith.constant 0 : i32
    return %c0_i32, %c0_i32_0 : i32, i32
  }
  func.func @transform_4(%arg0: i32) -> (i32, i32) {
    %c0_i32 = arith.constant 0 : i32
    %c0_i32_0 = arith.constant 0 : i32
    %c0_i32_1 = arith.constant 0 : i32
    return %c0_i32, %c0_i32_0 : i32, i32
  }
}

</mosaic_0001>

<llo_original>
// kernel: multi_head_attention.1
$region0: #{multi_head_attention.1}
  #allocation0 [shape = 'u32[]', space=smem, size = 0x4, offset = 0x4, fixed_abs, tag = 'smem constant byte address 0x4 - core index']
  #allocation1 [shape = 'u32[72,128]{1,0:T(1,128)}', space=vmem, size = 0x9000, scoped, tag = 'internal scratch']
  %s0 = inlined_call_operand.vmem [shape: bf16[16,64], index: 0, kind: input, shape index: {}]
  %s1 = inlined_call_operand.vmem [shape: bf16[64,192], index: 1, kind: input, shape index: {}]
  %s2 = inlined_call_operand.vmem [shape: bf16[64,64], index: 2, kind: input, shape index: {}]
  %s3 = inlined_call_operand.vmem [shape: f32[1,64], index: 3, kind: input, shape index: {}]
  %s4 = inlined_call_operand.hbm [shape: f32[16,64], index: 4, kind: output, shape index: {}]
  %s5 = sld [smem:[#allocation0]]
  $region26: #{multi_head_attention.1} parent=0
    _
  %s7 = ssub.s32 1, %s5
  %s8 = scalar_select 0, %s7, %s5
  $region1: #{multi_head_attention.1} parent=0
    #allocation2 [shape = 'u8[8192]{0}', space=vmem, size = 0x2000, scoped, tag = 'output window, operand 0, single buffered']
    #allocation3 [shape = 's32[1]{0}', space=sflag, size = 0x4, scoped, tag = 'scoped memory for multi_head_attention.1']
    %9 = vsyncpa [#allocation3], 0
    // Predicated region
    $region2: #{multi_head_attention.1} parent=1 // pred_check
      _
    $region3: #{multi_head_attention.1} parent=1 // pred_check_branch
      %11 = sbr.rel (0) target = $region5
    $region4: #{multi_head_attention.1} parent=1 // pred_region
      _
    $region5: #{multi_head_attention.1} parent=1 // pred_fallthru
      _
    // Predicated region
    $region6: #{multi_head_attention.1} parent=1 // pred_check
      _
    $region7: #{multi_head_attention.1} parent=1 // pred_check_branch
      %13 = sbr.rel (0) target = $region9
    $region8: #{multi_head_attention.1} parent=1 // pred_region
      _
    $region9: #{multi_head_attention.1} parent=1 // pred_fallthru
      _
    // Predicated region
    $region10: #{multi_head_attention.1} parent=1 // pred_check
      _
    $region11: #{multi_head_attention.1} parent=1 // pred_check_branch
      %15 = sbr.rel (0) target = $region13
    $region12: #{multi_head_attention.1} parent=1 // pred_region
      _
    $region13: #{multi_head_attention.1} parent=1 // pred_fallthru
      _
    // Predicated region
    $region14: #{multi_head_attention.1} parent=1 // pred_check
      _
    $region15: #{multi_head_attention.1} parent=1 // pred_check_branch
      %17 = sbr.rel (0) target = $region17
    $region16: #{multi_head_attention.1} parent=1 // pred_region
      _
    $region17: #{multi_head_attention.1} parent=1 // pred_fallthru
      _
    %v19 = vld [vmem:[%s0] sm:$0xf]
    %v20 = vld [vmem:[%s0 + $0x4] sm:$0xf]
    %v21 = vld [vmem:[%s1] sm:$0xff]
    %v22 = vld [vmem:[%s1 + $0x8] sm:$0xff]
    %v23 = vld [vmem:[%s1 + $0x10] sm:$0xff]
    %v24 = vld [vmem:[%s1 + $0x18] sm:$0xff]
    %v25 = vld [vmem:[%s1 + $0x20] sm:$0xff]
    %v26 = vld [vmem:[%s1 + $0x28] sm:$0xff]
    %v27 = vld [vmem:[%s1 + $0x30] sm:$0xff]
    %v28 = vld [vmem:[%s1 + $0x38] sm:$0xff]
    %v29 = vld [vmem:[%s2] sm:$0xf]
    %v30 = vld [vmem:[%s2 + $0x4] sm:$0xf]
    %v31 = vld [vmem:[%s2 + $0x8] sm:$0xf]
    %v32 = vld [vmem:[%s2 + $0xc] sm:$0xf]
    %v33 = vld [vmem:[%s2 + $0x10] sm:$0xf]
    %v34 = vld [vmem:[%s2 + $0x14] sm:$0xf]
    %v35 = vld [vmem:[%s2 + $0x18] sm:$0xf]
    %v36 = vld [vmem:[%s2 + $0x1c] sm:$0xf]
    %v39 = vunpack.c.l.b16 %v19
    %v40 = vunpack.c.l.b16 %v20
    %v41 = vpack.c.b16 %v40, %v39
    %v50 = vunpack.c.l.b16 %v21
    %v51 = vunpack.c.h.b16 %v21
    %v52 = vunpack.c.l.b16 %v22
    %v53 = vunpack.c.h.b16 %v22
    %v54 = vunpack.c.l.b16 %v23
    %v55 = vunpack.c.h.b16 %v23
    %v56 = vunpack.c.l.b16 %v24
    %v57 = vunpack.c.h.b16 %v24
    %v58 = vunpack.c.l.b16 %v25
    %v59 = vunpack.c.h.b16 %v25
    %v60 = vunpack.c.l.b16 %v26
    %v61 = vunpack.c.h.b16 %v26
    %v62 = vunpack.c.l.b16 %v27
    %v63 = vunpack.c.h.b16 %v27
    %v64 = vunpack.c.l.b16 %v28
    %v65 = vunpack.c.h.b16 %v28
    %v66 = vpack.c.b16 %v52, %v50
    %v67 = vpack.c.b16 %v53, %v51
    %v68 = vpack.c.b16 %v56, %v54
    %v69 = vpack.c.b16 %v57, %v55
    %v70 = vpack.c.b16 %v60, %v58
    %v71 = vpack.c.b16 %v61, %v59
    %v72 = vpack.c.b16 %v64, %v62
    %v73 = vpack.c.b16 %v65, %v63
    %vm82 = vcmask 523264
    %v84 = vsel %vm82, %v41, 0
    %86 = vmatpush.bf16.msra.mxu0 0
    %87 = vmatpush.bf16.msra.mxu0 0
    %88 = vmatpush.bf16.msra.mxu0 0
    %89 = vmatpush.bf16.msra.mxu0 0
    %90 = vmatpush.bf16.msra.mxu0 %v72
    %91 = vmatpush.bf16.msra.mxu0 %v70
    %92 = vmatpush.bf16.msra.mxu0 %v68
    %93 = vmatpush.bf16.msra.mxu0 %v66
    %94 = vmatmul.bf16.gmra.mxu0 %v84
    %v95 = vpop.f32.mrf.mxu0
    %v96 = vadd.f32 0.0, %v95
    %v97 = vpop.f32.mrf.mxu0
    %v98 = vadd.f32 0.0, %v97
    %99 = vdwg.mxu0
    %100 = vmatpush.bf16.msra.mxu0 0
    %101 = vmatpush.bf16.msra.mxu0 0
    %102 = vmatpush.bf16.msra.mxu0 0
    %103 = vmatpush.bf16.msra.mxu0 0
    %104 = vmatpush.bf16.msra.mxu0 %v73
    %105 = vmatpush.bf16.msra.mxu0 %v71
    %106 = vmatpush.bf16.msra.mxu0 %v69
    %107 = vmatpush.bf16.msra.mxu0 %v67
    %108 = vmatmul.bf16.gmra.mxu0 %v84
    %v109 = vpop.f32.mrf.mxu0
    %v110 = vadd.f32 0.0, %v109
    %v111 = vpop.f32.mrf.mxu0
    %v112 = vadd.f32 0.0, %v111
    %113 = vdwg.mxu0
    %v114 = vlaneseq
    %v115 = vshrl.u32 %v114, 7
    %v116 = vlaneseq
    %v117 = vand.u32 %v116, 127
    %vm118 = vcmp.le.s32.totalorder %v117, %v115
    %v119 = vld [vmem:[%s3] sm:$0x1]
    %v121 = vperm.slane %v119, 0
    %v123 = vpack.c.bf16 %v96, %v96
    %v124 = vpack.c.bf16 %v98, %v98
    %v125 = vpack.c.bf16 %v110, %v110
    %v126 = vpack.c.bf16 %v112, %v112
    %v128 = vunpack.c.l.b16 %v123
    %v129 = vpack.c.b16 %v128, %v128
    %130 = vrot.lane.b32.xlu0 %v129, 64
    %v131 = vpop.permute.xlu0 %130
    %vm132 = vcmask 130048
    %v134 = vsel %vm132, %v123, 0
    %v137 = vsel %vm132, %v131, 0
    %139 = vmatpush.bf16.xpose.msra.mxu0 0
    %140 = vmatpush.bf16.xpose.msra.mxu0 0
    %141 = vmatpush.bf16.xpose.msra.mxu0 0
    %142 = vmatpush.bf16.xpose.msra.mxu0 0
    %143 = vmatpush.bf16.xpose.msra.mxu0 0
    %144 = vmatpush.bf16.xpose.msra.mxu0 0
    %145 = vmatpush.bf16.xpose.msra.mxu0 0
    %146 = vmatpush.bf16.xpose.msra.mxu0 %v137
    %147 = vmatmul.bf16.gmra.mxu0 %v134
    %v148 = vpop.f32.mrf.mxu0
    %v149 = vadd.f32 0.0, %v148
    %v150 = vpop.f32.mrf.mxu0
    %151 = vdwg.mxu0
    %v153 = vunpack.c.l.b16 %v124
    %v154 = vpack.c.b16 %v153, %v153
    %155 = vrot.lane.b32.xlu0 %v154, 64
    %v156 = vpop.permute.xlu0 %155
    %v158 = vsel %vm132, %v124, 0
    %v161 = vsel %vm132, %v156, 0
    %163 = vmatpush.bf16.xpose.msra.mxu0 0
    %164 = vmatpush.bf16.xpose.msra.mxu0 0
    %165 = vmatpush.bf16.xpose.msra.mxu0 0
    %166 = vmatpush.bf16.xpose.msra.mxu0 0
    %167 = vmatpush.bf16.xpose.msra.mxu0 0
    %168 = vmatpush.bf16.xpose.msra.mxu0 0
    %169 = vmatpush.bf16.xpose.msra.mxu0 0
    %170 = vmatpush.bf16.xpose.msra.mxu0 %v161
    %171 = vmatmul.bf16.gmra.mxu0 %v158
    %v172 = vpop.f32.mrf.mxu0
    %v173 = vadd.f32 0.0, %v172
    %v174 = vpop.f32.mrf.mxu0
    %175 = vdwg.mxu0
    %v176 = vmul.f32 %v149, 0.25
    %v177 = vmul.f32 %v173, 0.25
    %vm178 = vcmask 64512
    %v179 = vsel %vm178, %v176, -inf
    %180 = vmax.xlane.f32.xlu0 %v179
    %v181 = vpop.xlane.xlu0 %180
    %v182 = vsel %vm178, %v177, -inf
    %183 = vmax.xlane.f32.xlu0 %v182
    %v184 = vpop.xlane.xlu0 %183
    %v185 = vsub.f32 %v176, %v181
    %v186 = vsub.f32 %v177, %v184
    %v187 = vmul.f32 %v185, 1.442695
    %v188 = vpow.pop %v187
    %v189 = vmul.f32 %v186, 1.442695
    %v190 = vpow.pop %v189
    %v191 = vsel %vm118, 1, 0
    %vm192 = vcmp.eq.s32.totalorder %v191, 1
    %v193 = vsel %vm192, %v188, 0.0
    %v194 = vsel %vm192, %v190, 0.0
    %v195 = vsel %vm178, %v193, 0.0
    %196 = vadd.xlane.f32.xlu0 %v195
    %v197 = vpop.xlane.xlu0 %196
    %v198 = vsel %vm178, %v194, 0.0
    %199 = vadd.xlane.f32.xlu0 %v198
    %v200 = vpop.xlane.xlu0 %199
    %v201 = vrcp.pop %v197
    %v202 = vrcp.pop %v200
    %v203 = vmul.f32 %v193, %v201
    %v204 = vmul.f32 %v194, %v202
    %v205 = vpack.c.bf16 %v203, %v203
    %v206 = vpack.c.bf16 %v204, %v204
    %v208 = vsel %vm178, %v205, 0
    %vm210 = vcmask 1043456
    %v212 = vsel %vm210, %v125, 0
    %214 = vmatpush.bf16.msra.mxu0 0
    %215 = vmatpush.bf16.msra.mxu0 0
    %216 = vmatpush.bf16.msra.mxu0 0
    %217 = vmatpush.bf16.msra.mxu0 0
    %218 = vmatpush.bf16.msra.mxu0 0
    %219 = vmatpush.bf16.msra.mxu0 0
    %220 = vmatpush.bf16.msra.mxu0 0
    %221 = vmatpush.bf16.msra.mxu0 %v212
    %222 = vmatmul.bf16.gmra.mxu0 %v208
    %v223 = vpop.f32.mrf.mxu0
    %v224 = vadd.f32 0.0, %v223
    %v225 = vpop.f32.mrf.mxu0
    %226 = vdwg.mxu0
    %v228 = vsel %vm178, %v206, 0
    %v231 = vsel %vm210, %v126, 0
    %233 = vmatpush.bf16.msra.mxu0 0
    %234 = vmatpush.bf16.msra.mxu0 0
    %235 = vmatpush.bf16.msra.mxu0 0
    %236 = vmatpush.bf16.msra.mxu0 0
    %237 = vmatpush.bf16.msra.mxu0 0
    %238 = vmatpush.bf16.msra.mxu0 0
    %239 = vmatpush.bf16.msra.mxu0 0
    %240 = vmatpush.bf16.msra.mxu0 %v231
    %241 = vmatmul.bf16.gmra.mxu0 %v228
    %v242 = vpop.f32.mrf.mxu0
    %v243 = vadd.f32 0.0, %v242
    %v244 = vpop.f32.mrf.mxu0
    %245 = vdwg.mxu0
    %v246 = vpack.c.bf16 %v243, %v224
    %v249 = vunpack.c.l.b16 %v29
    %v250 = vunpack.c.l.b16 %v30
    %v251 = vpack.c.b16 %v250, %v249
    %v254 = vsel %vm132, %v246, 0
    %256 = vmatpush.bf16.msra.mxu0 0
    %257 = vmatpush.bf16.msra.mxu0 0
    %258 = vmatpush.bf16.msra.mxu0 0
    %259 = vmatpush.bf16.msra.mxu0 0
    %260 = vmatpush.bf16.msra.mxu0 0
    %261 = vmatpush.bf16.msra.mxu0 0
    %262 = vmatpush.bf16.msra.mxu0 0
    %263 = vmatpush.bf16.msra.mxu0 %v251
    %264 = vmatmul.bf16.gmra.mxu0 %v254
    %v265 = vpop.f32.mrf.mxu0
    %v266 = vadd.f32 0.0, %v265
    %v267 = vpop.f32.mrf.mxu0
    %v268 = vadd.f32 0.0, %v267
    %269 = vdwg.mxu0
    %v270 = vadd.f32 %v121, %v266
    %v271 = vadd.f32 %v121, %v268
    %272 = vrot.lane.b32.xlu0 %v129, 112
    %v273 = vpop.permute.xlu0 %272
    %274 = vrot.lane.b32.xlu0 %v129, 48
    %v275 = vpop.permute.xlu0 %274
    %v277 = vsel %vm132, %v273, 0
    %v280 = vsel %vm132, %v275, 0
    %282 = vmatpush.bf16.xpose.msra.mxu0 0
    %283 = vmatpush.bf16.xpose.msra.mxu0 0
    %284 = vmatpush.bf16.xpose.msra.mxu0 0
    %285 = vmatpush.bf16.xpose.msra.mxu0 0
    %286 = vmatpush.bf16.xpose.msra.mxu0 0
    %287 = vmatpush.bf16.xpose.msra.mxu0 0
    %288 = vmatpush.bf16.xpose.msra.mxu0 0
    %289 = vmatpush.bf16.xpose.msra.mxu0 %v280
    %290 = vmatmul.bf16.gmra.mxu0 %v277
    %v291 = vpop.f32.mrf.mxu0
    %v292 = vadd.f32 0.0, %v291
    %v293 = vpop.f32.mrf.mxu0
    %294 = vdwg.mxu0
    %295 = vrot.lane.b32.xlu0 %v154, 112
    %v296 = vpop.permute.xlu0 %295
    %297 = vrot.lane.b32.xlu0 %v154, 48
    %v298 = vpop.permute.xlu0 %297
    %v300 = vsel %vm132, %v296, 0
    %v303 = vsel %vm132, %v298, 0
    %305 = vmatpush.bf16.xpose.msra.mxu0 0
    %306 = vmatpush.bf16.xpose.msra.mxu0 0
    %307 = vmatpush.bf16.xpose.msra.mxu0 0
    %308 = vmatpush.bf16.xpose.msra.mxu0 0
    %309 = vmatpush.bf16.xpose.msra.mxu0 0
    %310 = vmatpush.bf16.xpose.msra.mxu0 0
    %311 = vmatpush.bf16.xpose.msra.mxu0 0
    %312 = vmatpush.bf16.xpose.msra.mxu0 %v303
    %313 = vmatmul.bf16.gmra.mxu0 %v300
    %v314 = vpop.f32.mrf.mxu0
    %v315 = vadd.f32 0.0, %v314
    %v316 = vpop.f32.mrf.mxu0
    %317 = vdwg.mxu0
    %v318 = vmul.f32 %v292, 0.25
    %v319 = vmul.f32 %v315, 0.25
    %v320 = vsel %vm178, %v318, -inf
    %321 = vmax.xlane.f32.xlu0 %v320
    %v322 = vpop.xlane.xlu0 %321
    %v323 = vsel %vm178, %v319, -inf
    %324 = vmax.xlane.f32.xlu0 %v323
    %v325 = vpop.xlane.xlu0 %324
    %v326 = vsub.f32 %v318, %v322
    %v327 = vsub.f32 %v319, %v325
    %v328 = vmul.f32 %v326, 1.442695
    %v329 = vpow.pop %v328
    %v330 = vmul.f32 %v327, 1.442695
    %v331 = vpow.pop %v330
    %v332 = vsel %vm192, %v329, 0.0
    %v333 = vsel %vm192, %v331, 0.0
    %v334 = vsel %vm178, %v332, 0.0
    %335 = vadd.xlane.f32.xlu0 %v334
    %v336 = vpop.xlane.xlu0 %335
    %v337 = vsel %vm178, %v333, 0.0
    %338 = vadd.xlane.f32.xlu0 %v337
    %v339 = vpop.xlane.xlu0 %338
    %v340 = vrcp.pop %v336
    %v341 = vrcp.pop %v339
    %v342 = vmul.f32 %v332, %v340
    %v343 = vmul.f32 %v333, %v341
    %v344 = vpack.c.bf16 %v342, %v342
    %v345 = vpack.c.bf16 %v343, %v343
    %v347 = vunpack.c.l.b16 %v125
    %v348 = vpack.c.b16 %v347, %v347
    %349 = vrot.lane.b32.xlu0 %v348, 112
    %v350 = vpop.permute.xlu0 %349
    %v352 = vsel %vm178, %v344, 0
    %v355 = vsel %vm210, %v350, 0
    %357 = vmatpush.bf16.msra.mxu0 0
    %358 = vmatpush.bf16.msra.mxu0 0
    %359 = vmatpush.bf16.msra.mxu0 0
    %360 = vmatpush.bf16.msra.mxu0 0
    %361 = vmatpush.bf16.msra.mxu0 0
    %362 = vmatpush.bf16.msra.mxu0 0
    %363 = vmatpush.bf16.msra.mxu0 0
    %364 = vmatpush.bf16.msra.mxu0 %v355
    %365 = vmatmul.bf16.gmra.mxu0 %v352
    %v366 = vpop.f32.mrf.mxu0
    %v367 = vadd.f32 0.0, %v366
    %v368 = vpop.f32.mrf.mxu0
    %369 = vdwg.mxu0
    %v371 = vunpack.c.l.b16 %v126
    %v372 = vpack.c.b16 %v371, %v371
    %373 = vrot.lane.b32.xlu0 %v372, 112
    %v374 = vpop.permute.xlu0 %373
    %v376 = vsel %vm178, %v345, 0
    %v379 = vsel %vm210, %v374, 0
    %381 = vmatpush.bf16.msra.mxu0 0
    %382 = vmatpush.bf16.msra.mxu0 0
    %383 = vmatpush.bf16.msra.mxu0 0
    %384 = vmatpush.bf16.msra.mxu0 0
    %385 = vmatpush.bf16.msra.mxu0 0
    %386 = vmatpush.bf16.msra.mxu0 0
    %387 = vmatpush.bf16.msra.mxu0 0
    %388 = vmatpush.bf16.msra.mxu0 %v379
    %389 = vmatmul.bf16.gmra.mxu0 %v376
    %v390 = vpop.f32.mrf.mxu0
    %v391 = vadd.f32 0.0, %v390
    %v392 = vpop.f32.mrf.mxu0
    %393 = vdwg.mxu0
    %v394 = vpack.c.bf16 %v391, %v367
    %v397 = vunpack.c.l.b16 %v31
    %v398 = vunpack.c.l.b16 %v32
    %v399 = vpack.c.b16 %v398, %v397
    %v402 = vsel %vm132, %v394, 0
    %404 = vmatpush.bf16.msra.mxu0 0
    %405 = vmatpush.bf16.msra.mxu0 0
    %406 = vmatpush.bf16.msra.mxu0 0
    %407 = vmatpush.bf16.msra.mxu0 0
    %408 = vmatpush.bf16.msra.mxu0 0
    %409 = vmatpush.bf16.msra.mxu0 0
    %410 = vmatpush.bf16.msra.mxu0 0
    %411 = vmatpush.bf16.msra.mxu0 %v399
    %412 = vmatmul.bf16.gmra.mxu0 %v402
    %v413 = vpop.f32.mrf.mxu0
    %v414 = vadd.f32 0.0, %v413
    %v415 = vpop.f32.mrf.mxu0
    %v416 = vadd.f32 0.0, %v415
    %417 = vdwg.mxu0
    %v418 = vadd.f32 %v270, %v414
    %v419 = vadd.f32 %v271, %v416
    %420 = vrot.lane.b32.xlu0 %v129, 96
    %v421 = vpop.permute.xlu0 %420
    %422 = vrot.lane.b32.xlu0 %v129, 32
    %v423 = vpop.permute.xlu0 %422
    %v425 = vsel %vm132, %v421, 0
    %v428 = vsel %vm132, %v423, 0
    %430 = vmatpush.bf16.xpose.msra.mxu0 0
    %431 = vmatpush.bf16.xpose.msra.mxu0 0
    %432 = vmatpush.bf16.xpose.msra.mxu0 0
    %433 = vmatpush.bf16.xpose.msra.mxu0 0
    %434 = vmatpush.bf16.xpose.msra.mxu0 0
    %435 = vmatpush.bf16.xpose.msra.mxu0 0
    %436 = vmatpush.bf16.xpose.msra.mxu0 0
    %437 = vmatpush.bf16.xpose.msra.mxu0 %v428
    %438 = vmatmul.bf16.gmra.mxu0 %v425
    %v439 = vpop.f32.mrf.mxu0
    %v440 = vadd.f32 0.0, %v439
    %v441 = vpop.f32.mrf.mxu0
    %442 = vdwg.mxu0
    %443 = vrot.lane.b32.xlu0 %v154, 96
    %v444 = vpop.permute.xlu0 %443
    %445 = vrot.lane.b32.xlu0 %v154, 32
    %v446 = vpop.permute.xlu0 %445
    %v448 = vsel %vm132, %v444, 0
    %v451 = vsel %vm132, %v446, 0
    %453 = vmatpush.bf16.xpose.msra.mxu0 0
    %454 = vmatpush.bf16.xpose.msra.mxu0 0
    %455 = vmatpush.bf16.xpose.msra.mxu0 0
    %456 = vmatpush.bf16.xpose.msra.mxu0 0
    %457 = vmatpush.bf16.xpose.msra.mxu0 0
    %458 = vmatpush.bf16.xpose.msra.mxu0 0
    %459 = vmatpush.bf16.xpose.msra.mxu0 0
    %460 = vmatpush.bf16.xpose.msra.mxu0 %v451
    %461 = vmatmul.bf16.gmra.mxu0 %v448
    %v462 = vpop.f32.mrf.mxu0
    %v463 = vadd.f32 0.0, %v462
    %v464 = vpop.f32.mrf.mxu0
    %465 = vdwg.mxu0
    %v466 = vmul.f32 %v440, 0.25
    %v467 = vmul.f32 %v463, 0.25
    %v468 = vsel %vm178, %v466, -inf
    %469 = vmax.xlane.f32.xlu0 %v468
    %v470 = vpop.xlane.xlu0 %469
    %v471 = vsel %vm178, %v467, -inf
    %472 = vmax.xlane.f32.xlu0 %v471
    %v473 = vpop.xlane.xlu0 %472
    %v474 = vsub.f32 %v466, %v470
    %v475 = vsub.f32 %v467, %v473
    %v476 = vmul.f32 %v474, 1.442695
    %v477 = vpow.pop %v476
    %v478 = vmul.f32 %v475, 1.442695
    %v479 = vpow.pop %v478
    %v480 = vsel %vm192, %v477, 0.0
    %v481 = vsel %vm192, %v479, 0.0
    %v482 = vsel %vm178, %v480, 0.0
    %483 = vadd.xlane.f32.xlu0 %v482
    %v484 = vpop.xlane.xlu0 %483
    %v485 = vsel %vm178, %v481, 0.0
    %486 = vadd.xlane.f32.xlu0 %v485
    %v487 = vpop.xlane.xlu0 %486
    %v488 = vrcp.pop %v484
    %v489 = vrcp.pop %v487
    %v490 = vmul.f32 %v480, %v488
    %v491 = vmul.f32 %v481, %v489
    %v492 = vpack.c.bf16 %v490, %v490
    %v493 = vpack.c.bf16 %v491, %v491
    %494 = vrot.lane.b32.xlu0 %v348, 96
    %v495 = vpop.permute.xlu0 %494
    %v497 = vsel %vm178, %v492, 0
    %v500 = vsel %vm210, %v495, 0
    %502 = vmatpush.bf16.msra.mxu0 0
    %503 = vmatpush.bf16.msra.mxu0 0
    %504 = vmatpush.bf16.msra.mxu0 0
    %505 = vmatpush.bf16.msra.mxu0 0
    %506 = vmatpush.bf16.msra.mxu0 0
    %507 = vmatpush.bf16.msra.mxu0 0
    %508 = vmatpush.bf16.msra.mxu0 0
    %509 = vmatpush.bf16.msra.mxu0 %v500
    %510 = vmatmul.bf16.gmra.mxu0 %v497
    %v511 = vpop.f32.mrf.mxu0
    %v512 = vadd.f32 0.0, %v511
    %v513 = vpop.f32.mrf.mxu0
    %514 = vdwg.mxu0
    %515 = vrot.lane.b32.xlu0 %v372, 96
    %v516 = vpop.permute.xlu0 %515
    %v518 = vsel %vm178, %v493, 0
    %v521 = vsel %vm210, %v516, 0
    %523 = vmatpush.bf16.msra.mxu0 0
    %524 = vmatpush.bf16.msra.mxu0 0
    %525 = vmatpush.bf16.msra.mxu0 0
    %526 = vmatpush.bf16.msra.mxu0 0
    %527 = vmatpush.bf16.msra.mxu0 0
    %528 = vmatpush.bf16.msra.mxu0 0
    %529 = vmatpush.bf16.msra.mxu0 0
    %530 = vmatpush.bf16.msra.mxu0 %v521
    %531 = vmatmul.bf16.gmra.mxu0 %v518
    %v532 = vpop.f32.mrf.mxu0
    %v533 = vadd.f32 0.0, %v532
    %v534 = vpop.f32.mrf.mxu0
    %535 = vdwg.mxu0
    %v536 = vpack.c.bf16 %v533, %v512
    %v539 = vunpack.c.l.b16 %v33
    %v540 = vunpack.c.l.b16 %v34
    %v541 = vpack.c.b16 %v540, %v539
    %v544 = vsel %vm132, %v536, 0
    %546 = vmatpush.bf16.msra.mxu0 0
    %547 = vmatpush.bf16.msra.mxu0 0
    %548 = vmatpush.bf16.msra.mxu0 0
    %549 = vmatpush.bf16.msra.mxu0 0
    %550 = vmatpush.bf16.msra.mxu0 0
    %551 = vmatpush.bf16.msra.mxu0 0
    %552 = vmatpush.bf16.msra.mxu0 0
    %553 = vmatpush.bf16.msra.mxu0 %v541
    %554 = vmatmul.bf16.gmra.mxu0 %v544
    %v555 = vpop.f32.mrf.mxu0
    %v556 = vadd.f32 0.0, %v555
    %v557 = vpop.f32.mrf.mxu0
    %v558 = vadd.f32 0.0, %v557
    %559 = vdwg.mxu0
    %v560 = vadd.f32 %v418, %v556
    %v561 = vadd.f32 %v419, %v558
    %562 = vrot.lane.b32.xlu0 %v129, 80
    %v563 = vpop.permute.xlu0 %562
    %564 = vrot.lane.b32.xlu0 %v129, 16
    %v565 = vpop.permute.xlu0 %564
    %v567 = vsel %vm132, %v563, 0
    %v570 = vsel %vm132, %v565, 0
    %572 = vmatpush.bf16.xpose.msra.mxu0 0
    %573 = vmatpush.bf16.xpose.msra.mxu0 0
    %574 = vmatpush.bf16.xpose.msra.mxu0 0
    %575 = vmatpush.bf16.xpose.msra.mxu0 0
    %576 = vmatpush.bf16.xpose.msra.mxu0 0
    %577 = vmatpush.bf16.xpose.msra.mxu0 0
    %578 = vmatpush.bf16.xpose.msra.mxu0 0
    %579 = vmatpush.bf16.xpose.msra.mxu0 %v570
    %580 = vmatmul.bf16.gmra.mxu0 %v567
    %v581 = vpop.f32.mrf.mxu0
    %v582 = vadd.f32 0.0, %v581
    %v583 = vpop.f32.mrf.mxu0
    %584 = vdwg.mxu0
    %585 = vrot.lane.b32.xlu0 %v154, 80
    %v586 = vpop.permute.xlu0 %585
    %587 = vrot.lane.b32.xlu0 %v154, 16
    %v588 = vpop.permute.xlu0 %587
    %v590 = vsel %vm132, %v586, 0
    %v593 = vsel %vm132, %v588, 0
    %595 = vmatpush.bf16.xpose.msra.mxu0 0
    %596 = vmatpush.bf16.xpose.msra.mxu0 0
    %597 = vmatpush.bf16.xpose.msra.mxu0 0
    %598 = vmatpush.bf16.xpose.msra.mxu0 0
    %599 = vmatpush.bf16.xpose.msra.mxu0 0
    %600 = vmatpush.bf16.xpose.msra.mxu0 0
    %601 = vmatpush.bf16.xpose.msra.mxu0 0
    %602 = vmatpush.bf16.xpose.msra.mxu0 %v593
    %603 = vmatmul.bf16.gmra.mxu0 %v590
    %v604 = vpop.f32.mrf.mxu0
    %v605 = vadd.f32 0.0, %v604
    %v606 = vpop.f32.mrf.mxu0
    %607 = vdwg.mxu0
    %v608 = vmul.f32 %v582, 0.25
    %v609 = vmul.f32 %v605, 0.25
    %v610 = vsel %vm178, %v608, -inf
    %611 = vmax.xlane.f32.xlu0 %v610
    %v612 = vpop.xlane.xlu0 %611
    %v613 = vsel %vm178, %v609, -inf
    %614 = vmax.xlane.f32.xlu0 %v613
    %v615 = vpop.xlane.xlu0 %614
    %v616 = vsub.f32 %v608, %v612
    %v617 = vsub.f32 %v609, %v615
    %v618 = vmul.f32 %v616, 1.442695
    %v619 = vpow.pop %v618
    %v620 = vmul.f32 %v617, 1.442695
    %v621 = vpow.pop %v620
    %v622 = vsel %vm192, %v619, 0.0
    %v623 = vsel %vm192, %v621, 0.0
    %v624 = vsel %vm178, %v622, 0.0
    %625 = vadd.xlane.f32.xlu0 %v624
    %v626 = vpop.xlane.xlu0 %625
    %v627 = vsel %vm178, %v623, 0.0
    %628 = vadd.xlane.f32.xlu0 %v627
    %v629 = vpop.xlane.xlu0 %628
    %v630 = vrcp.pop %v626
    %v631 = vrcp.pop %v629
    %v632 = vmul.f32 %v622, %v630
    %v633 = vmul.f32 %v623, %v631
    %v634 = vpack.c.bf16 %v632, %v632
    %v635 = vpack.c.bf16 %v633, %v633
    %636 = vrot.lane.b32.xlu0 %v348, 80
    %v637 = vpop.permute.xlu0 %636
    %v639 = vsel %vm178, %v634, 0
    %v642 = vsel %vm210, %v637, 0
    %644 = vmatpush.bf16.msra.mxu0 0
    %645 = vmatpush.bf16.msra.mxu0 0
    %646 = vmatpush.bf16.msra.mxu0 0
    %647 = vmatpush.bf16.msra.mxu0 0
    %648 = vmatpush.bf16.msra.mxu0 0
    %649 = vmatpush.bf16.msra.mxu0 0
    %650 = vmatpush.bf16.msra.mxu0 0
    %651 = vmatpush.bf16.msra.mxu0 %v642
    %652 = vmatmul.bf16.gmra.mxu0 %v639
    %v653 = vpop.f32.mrf.mxu0
    %v654 = vadd.f32 0.0, %v653
    %v655 = vpop.f32.mrf.mxu0
    %656 = vdwg.mxu0
    %657 = vrot.lane.b32.xlu0 %v372, 80
    %v658 = vpop.permute.xlu0 %657
    %v660 = vsel %vm178, %v635, 0
    %v663 = vsel %vm210, %v658, 0
    %665 = vmatpush.bf16.msra.mxu0 0
    %666 = vmatpush.bf16.msra.mxu0 0
    %667 = vmatpush.bf16.msra.mxu0 0
    %668 = vmatpush.bf16.msra.mxu0 0
    %669 = vmatpush.bf16.msra.mxu0 0
    %670 = vmatpush.bf16.msra.mxu0 0
    %671 = vmatpush.bf16.msra.mxu0 0
    %672 = vmatpush.bf16.msra.mxu0 %v663
    %673 = vmatmul.bf16.gmra.mxu0 %v660
    %v674 = vpop.f32.mrf.mxu0
    %v675 = vadd.f32 0.0, %v674
    %v676 = vpop.f32.mrf.mxu0
    %677 = vdwg.mxu0
    %v678 = vpack.c.bf16 %v675, %v654
    %v681 = vunpack.c.l.b16 %v35
    %v682 = vunpack.c.l.b16 %v36
    %v683 = vpack.c.b16 %v682, %v681
    %v686 = vsel %vm132, %v678, 0
    %688 = vmatpush.bf16.msra.mxu0 0
    %689 = vmatpush.bf16.msra.mxu0 0
    %690 = vmatpush.bf16.msra.mxu0 0
    %691 = vmatpush.bf16.msra.mxu0 0
    %692 = vmatpush.bf16.msra.mxu0 0
    %693 = vmatpush.bf16.msra.mxu0 0
    %694 = vmatpush.bf16.msra.mxu0 0
    %695 = vmatpush.bf16.msra.mxu0 %v683
    %696 = vmatmul.bf16.gmra.mxu0 %v686
    %v697 = vpop.f32.mrf.mxu0
    %v698 = vadd.f32 0.0, %v697
    %v699 = vpop.f32.mrf.mxu0
    %v700 = vadd.f32 0.0, %v699
    %701 = vdwg.mxu0
    %v702 = vadd.f32 %v560, %v698
    %v703 = vadd.f32 %v561, %v700
    %704 = vst.msk [vmem:[#allocation2] sm:$0xff] %vm82, %v702
    %705 = vst.msk [vmem:[#allocation2 + $0x8] sm:$0xff] %vm82, %v703
    // Predicated region
    $region18: #{multi_head_attention.1} parent=1 // pred_check
      _
    $region19: #{multi_head_attention.1} parent=1 // pred_check_branch
      %707 = sbr.rel (0) target = $region21
    $region20: #{multi_head_attention.1} parent=1 // pred_region
      %709 = vsyncadd [#allocation3], 0
      %s710 = sshll.u32 [#allocation2], 4
      %s711 = int_to_ptr.vmem [resolvable:$true] %s710
      %s712 = sshll.u32 %s4, 4
      %s713 = int_to_ptr.hbm [resolvable:$true] %s712
      %718 = dma.vmem_to_hbm [thread:$0]  %s711, 256, %s713, [#allocation3], 128, 128, 8
    $region21: #{multi_head_attention.1} parent=1 // pred_fallthru
      _
    // Predicated region
    $region22: #{multi_head_attention.1} parent=1 // pred_check
      _
    $region23: #{multi_head_attention.1} parent=1 // pred_check_branch
      %720 = sbr.rel (0) target = $region25
    $region24: #{multi_head_attention.1} parent=1 // pred_region
      %722 = dma.done [#allocation3], 256
    $region25: #{multi_head_attention.1} parent=1 // pred_fallthru
      _
    %723 = vsyncpa [#allocation3], 1

</llo_original>
